<compile_context>
chip_gen: v5e
topology: v5e:2x2
jax: 0.10.0
libtpu: 0.0.40
codegen_flags: <defaults>
</compile_context>

<pallas_src>
import functools

import jax
import jax.numpy as jnp
from jax.experimental import pallas as pl
from jax.experimental.pallas import tpu as pltpu


def _make_invdepth_kernel(Cout, min_depth):
    inv_min_depth = 1.0 / float(min_depth)

    def kernel(cols_ref, w_ref, b_ref, o_ref):
        # cols_ref: (NB, 9*C, THW)  im2col block (lane-dense spatial tile)
        # w_ref   : (Cout, 9*C, 1)  f32 flattened conv weights (VMEM, shared)
        # b_ref   : (Cout,)         f32 bias (SMEM)
        # o_ref   : (NB, Cout, THW) output block (lane-dense)
        cols = cols_ref[...].astype(jnp.float32)          # widen in-register only
        outs = []
        for o in range(Cout):
            # VPU broadcast-multiply + XLU cross-sublane reduce over the 9*C taps.
            z = jnp.sum(cols * w_ref[o], axis=1, keepdims=True)   # (NB, 1, THW)
            z = z + b_ref[o]                                      # SMEM scalar bias
            outs.append(jax.nn.sigmoid(z) * inv_min_depth)        # EUP/VPU epilogue
        out = outs[0] if Cout == 1 else jnp.concatenate(outs, axis=1)
        o_ref[...] = out.astype(o_ref.dtype)

    return kernel


def _largest_divisor(n, candidates):
    for c in candidates:
        if n % c == 0:
            return c
    return 1


def _pick_spatial_tile(hw, max_elems):
    """Largest multiple-of-128 divisor of hw that fits max_elems (or hw itself)."""
    if hw <= max_elems:
        return hw
    t = (max_elems // 128) * 128
    while t >= 128:
        if hw % t == 0:
            return t
        t -= 128
    return hw  # fallback: full extent (always a legal block dim)


@functools.partial(jax.jit, static_argnames=("min_depth",))
def invdepth_forward(x, w, b, min_depth=0.5):
    """x: (N, C, H, W); w: (Cout, C, 3, 3); b: (Cout,). Returns (N, Cout, H, W)."""
    N, C, H, W = x.shape
    Cout = w.shape[0]
    HW = H * W
    K = 9 * C

    # --- im2col in XLA (padding folded into the shifted slices):
    #     cols[n, (kh*3+kw)*C + c, i*W + j] = x_pad[n, c, i+kh, j+kw]
    xp = jnp.pad(x, ((0, 0), (0, 0), (1, 1), (1, 1)))
    cols = jnp.stack(
        [xp[:, :, kh:kh + H, kw:kw + W] for kh in range(3) for kw in range(3)],
        axis=1)                                   # (N, 9, C, H, W)
    cols = cols.reshape(N, K, HW)                 # lane-dense: last dim = H*W

    # Flatten weights to match the (tap, channel) ordering of `cols`.
    w_flat = jnp.transpose(w, (0, 2, 3, 1)).reshape(Cout, K, 1).astype(jnp.float32)
    b_f32 = b.astype(jnp.float32)

    # --- tiling: whole batch tile per step; lane-dense spatial tiles under a VMEM budget.
    NB = _largest_divisor(N, (8, 4, 2, 1))
    itemsize = jnp.dtype(x.dtype).itemsize
    vmem_budget = 6 * 1024 * 1024                 # per cols buffer (Pallas double-buffers)
    max_thw = max(128, vmem_budget // max(1, NB * K * itemsize))
    THW = _pick_spatial_tile(HW, max_thw)

    grid = (N // NB, HW // THW)
    kernel = _make_invdepth_kernel(Cout, min_depth)

    out = pl.pallas_call(
        kernel,
        out_shape=jax.ShapeDtypeStruct((N, Cout, HW), x.dtype),
        grid=grid,
        in_specs=[
            pl.BlockSpec((NB, K, THW), lambda i, j: (i, 0, j)),
            pl.BlockSpec((Cout, K, 1), lambda i, j: (0, 0, 0)),
            pl.BlockSpec(memory_space=pltpu.MemorySpace.SMEM),
        ],
        out_specs=pl.BlockSpec((NB, Cout, THW), lambda i, j: (i, 0, j)),
        compiler_params=pltpu.CompilerParams(
            dimension_semantics=("parallel", "parallel")),
    )(cols, w_flat, b_f32)

    # Free metadata reshape back to NCHW.
    return out.reshape(N, Cout, H, W)


def _reference(x, w, b, min_depth=0.5):
    xp = jnp.pad(x, ((0, 0), (0, 0), (1, 1), (1, 1)))
    y = jax.lax.conv_general_dilated(
        xp.astype(jnp.float32), w.astype(jnp.float32),
        window_strides=(1, 1), padding="VALID",
        dimension_numbers=("NCHW", "OIHW", "NCHW"))
    y = y + b.reshape(1, -1, 1, 1)
    return jax.nn.sigmoid(y) / min_depth


if __name__ == "__main__":
    key = jax.random.PRNGKey(0)
    k_x, k_w, k_b = jax.random.split(key, 3)

    N, C, H, W = 2, 4, 16, 16
    Cout = 1
    min_depth = 0.5

    x = jax.random.normal(k_x, (N, C, H, W), dtype=jnp.float32)
    # Deterministic init mimicking nn.Conv2d default (uniform in +-1/sqrt(fan_in))
    fan_in = C * 3 * 3
    bound = 1.0 / (fan_in ** 0.5)
    w = jax.random.uniform(k_w, (Cout, C, 3, 3), jnp.float32, -bound, bound)
    b = jax.random.uniform(k_b, (Cout,), jnp.float32, -bound, bound)

    out = invdepth_forward(x, w, b, min_depth=min_depth)
    out = jax.block_until_ready(out)

    ref = _reference(x, w, b, min_depth=min_depth)
    assert out.shape == (N, Cout, H, W)
    assert jnp.allclose(out, ref.astype(out.dtype), atol=1e-5, rtol=1e-5), (
        float(jnp.max(jnp.abs(out - ref.astype(out.dtype)))))

    print("KERNEL_OK")
</pallas_src>

<mosaic_0001>
module attributes {stable_mosaic.version = 11 : i64} {
  func.func @kernel(%arg0: i32, %arg1: i32, %arg2: memref<2x36x256xf32, #tpu.memory_space<vmem>>, %arg3: memref<1x36x1xf32, #tpu.memory_space<vmem>>, %arg4: memref<1xf32, #tpu.memory_space<smem>>, %arg5: memref<2x1x256xf32, #tpu.memory_space<vmem>>) attributes {dimension_semantics = [#tpu.dimension_semantics<parallel>, #tpu.dimension_semantics<parallel>], iteration_bounds = array<i64: 1, 1>, scalar_prefetch = 0 : i64, scratch_operands = 0 : i64, tpu.core_type = #tpu.core_type<tc>, window_params = [{transform_indices = @transform_0, window_bounds = array<i64: 2, 36, 256>}, {pipeline_mode = #tpu.pipeline_mode<synchronous>, transform_indices = @transform_1, window_bounds = array<i64: 1, 36, 1>}, {transform_indices = @transform_2, window_bounds = array<i64: 1>}, {transform_indices = @transform_3, window_bounds = array<i64: 2, 1, 256>}]} {
    %c0 = arith.constant 0 : index
    %c0_0 = arith.constant 0 : index
    %c0_1 = arith.constant 0 : index
    %0 = vector.load %arg2[%c0, %c0_0, %c0_1] : memref<2x36x256xf32, #tpu.memory_space<vmem>>, vector<2x36x256xf32>
    %c0_2 = arith.constant 0 : index
    %c0_3 = arith.constant 0 : index
    %c0_4 = arith.constant 0 : index
    %1 = vector.load %arg3[%c0_2, %c0_3, %c0_4] : memref<1x36x1xf32, #tpu.memory_space<vmem>>, vector<1x36x1xf32>
    %2 = vector.shape_cast %1 : vector<1x36x1xf32> to vector<36x1xf32>
    %3 = vector.shape_cast %2 : vector<36x1xf32> to vector<1x36x1xf32>
    %4 = vector.broadcast %3 : vector<1x36x1xf32> to vector<2x36x256xf32>
    %5 = arith.mulf %0, %4 : vector<2x36x256xf32>
    %cst = arith.constant dense<0.000000e+00> : vector<2x256xf32>
    %6 = vector.multi_reduction <add>, %5, %cst [1] : vector<2x36x256xf32> to vector<2x256xf32>
    %7 = vector.shape_cast %6 : vector<2x256xf32> to vector<2x1x256xf32>
    %c0_5 = arith.constant 0 : index
    %8 = memref.load %arg4[%c0_5] : memref<1xf32, #tpu.memory_space<smem>>
    %9 = vector.broadcast %8 : f32 to vector<2x1x256xf32>
    %10 = arith.addf %7, %9 : vector<2x1x256xf32>
    %11 = arith.negf %10 : vector<2x1x256xf32>
    %12 = math.exp %11 : vector<2x1x256xf32>
    %cst_6 = arith.constant 1.000000e+00 : f32
    %13 = vector.broadcast %cst_6 : f32 to vector<2x1x256xf32>
    %14 = arith.addf %13, %12 : vector<2x1x256xf32>
    %15 = arith.divf %13, %14 : vector<2x1x256xf32>
    %cst_7 = arith.constant 2.000000e+00 : f32
    %16 = vector.broadcast %cst_7 : f32 to vector<2x1x256xf32>
    %17 = arith.mulf %15, %16 : vector<2x1x256xf32>
    %c0_8 = arith.constant 0 : index
    %c0_9 = arith.constant 0 : index
    %c0_10 = arith.constant 0 : index
    %18 = vector.load %arg5[%c0_8, %c0_9, %c0_10] : memref<2x1x256xf32, #tpu.memory_space<vmem>>, vector<2x1x256xf32>
    tpu.vector_store %arg5[%c0_8, %c0_9, %c0_10], %17 {strides = array<i32>} : memref<2x1x256xf32, #tpu.memory_space<vmem>>, vector<2x1x256xf32>,
    return
  }
  func.func @transform_0(%arg0: i32, %arg1: i32) -> (i32, i32, i32) {
    %c0_i32 = arith.constant 0 : i32
    %c0_i32_0 = arith.constant 0 : i32
    return %arg0, %c0_i32, %arg1 : i32, i32, i32
  }
  func.func @transform_1(%arg0: i32, %arg1: i32) -> (i32, i32, i32) {
    %c0_i32 = arith.constant 0 : i32
    %c0_i32_0 = arith.constant 0 : i32
    %c0_i32_1 = arith.constant 0 : i32
    %c0_i32_2 = arith.constant 0 : i32
    return %c0_i32, %c0_i32_0, %c0_i32_1 : i32, i32, i32
  }
  func.func @transform_2(%arg0: i32, %arg1: i32) -> i32 {
    %c0_i32 = arith.constant 0 : i32
    %c0_i32_0 = arith.constant 0 : i32
    return %c0_i32 : i32
  }
  func.func @transform_3(%arg0: i32, %arg1: i32) -> (i32, i32, i32) {
    %c0_i32 = arith.constant 0 : i32
    %c0_i32_0 = arith.constant 0 : i32
    return %arg0, %c0_i32, %arg1 : i32, i32, i32
  }
}

</mosaic_0001>

<llo_original>
// kernel: invdepth_forward.1
$region0: #{invdepth_forward.1}
  #allocation0 [shape = 'u32[]', space=smem, size = 0x4, offset = 0x4, fixed_abs, tag = 'smem constant byte address 0x4 - core index']
  #allocation1 [shape = 'u32[72,128]{1,0:T(1,128)}', space=vmem, size = 0x9000, scoped, tag = 'internal scratch']
  #allocation2 [shape = 'f32[1]{0:T(128)S(6)}', space=smem, size = 0x200, scoped, tag = 'scoped memory for invdepth_forward.1']
  %s0 = inlined_call_operand.vmem [shape: f32[2,36,256], index: 0, kind: input, shape index: {}]
  %s1 = inlined_call_operand.vmem [shape: f32[1,36,1], index: 1, kind: input, shape index: {}]
  %s2 = inlined_call_operand.<no memory space> [shape: f32[1], index: 2, kind: input, shape index: {}]
  %s3 = inlined_call_operand.vmem [shape: f32[2,1,256], index: 3, kind: output, shape index: {}]
  %s4 = sld [smem:[#allocation0]]
  $region22: #{invdepth_forward.1} parent=0
    _
  %s6 = ssub.s32 1, %s4
  %s7 = scalar_select 0, %s6, %s4
  %8 = sst [smem:[#allocation2]] %s2
  // Predicated region
  $region2: #{invdepth_forward.1} parent=0 // pred_check
    _
  $region3: #{invdepth_forward.1} parent=0 // pred_check_branch
    %10 = sbr.rel (0) target = $region5
  $region4: #{invdepth_forward.1} parent=0 // pred_region
    _
  $region5: #{invdepth_forward.1} parent=0 // pred_fallthru
    _
  // Predicated region
  $region6: #{invdepth_forward.1} parent=0 // pred_check
    _
  $region7: #{invdepth_forward.1} parent=0 // pred_check_branch
    %12 = sbr.rel (0) target = $region9
  $region8: #{invdepth_forward.1} parent=0 // pred_region
    _
  $region9: #{invdepth_forward.1} parent=0 // pred_fallthru
    _
  // Predicated region
  $region10: #{invdepth_forward.1} parent=0 // pred_check
    _
  $region11: #{invdepth_forward.1} parent=0 // pred_check_branch
    %14 = sbr.rel (0) target = $region13
  $region12: #{invdepth_forward.1} parent=0 // pred_region
    _
  $region13: #{invdepth_forward.1} parent=0 // pred_fallthru
    _
  %v15 = vld [vmem:[%s0] sm:$0xff]
  %v16 = vld [vmem:[%s0 + $0x8] sm:$0xff]
  %v17 = vld [vmem:[%s0 + $0x10] sm:$0xff]
  %v18 = vld [vmem:[%s0 + $0x18] sm:$0xff]
  %v19 = vld [vmem:[%s0 + $0x20] sm:$0xff]
  %v20 = vld [vmem:[%s0 + $0x28] sm:$0xff]
  %v21 = vld [vmem:[%s0 + $0x30] sm:$0xff]
  %v22 = vld [vmem:[%s0 + $0x38] sm:$0xff]
  %v23 = vld [vmem:[%s0 + $0x40] sm:$0xf]
  %v24 = vld [vmem:[%s0 + $0x48] sm:$0xf]
  %v25 = vld [vmem:[%s0 + $0x50] sm:$0xff]
  %v26 = vld [vmem:[%s0 + $0x58] sm:$0xff]
  %v27 = vld [vmem:[%s0 + $0x60] sm:$0xff]
  %v28 = vld [vmem:[%s0 + $0x68] sm:$0xff]
  %v29 = vld [vmem:[%s0 + $0x70] sm:$0xff]
  %v30 = vld [vmem:[%s0 + $0x78] sm:$0xff]
  %v31 = vld [vmem:[%s0 + $0x80] sm:$0xff]
  %v32 = vld [vmem:[%s0 + $0x88] sm:$0xff]
  %v33 = vld [vmem:[%s0 + $0x90] sm:$0xf]
  %v34 = vld [vmem:[%s0 + $0x98] sm:$0xf]
  %v35 = vld [vmem:[%s1] sm:$0xff]
  %v36 = vld [vmem:[%s1 + $0x8] sm:$0xff]
  %v37 = vld [vmem:[%s1 + $0x10] sm:$0xff]
  %v38 = vld [vmem:[%s1 + $0x18] sm:$0xff]
  %v39 = vld [vmem:[%s1 + $0x20] sm:$0xf]
  %41 = vset.pattern.permute.xlu0 0
  %42 = vperm.xlu0 %41, %v35
  %v43 = vpop.permute.xlu0 %42
  %46 = vset.pattern.permute.xlu0 0
  %47 = vperm.xlu0 %46, %v36
  %v48 = vpop.permute.xlu0 %47
  %51 = vset.pattern.permute.xlu0 0
  %52 = vperm.xlu0 %51, %v37
  %v53 = vpop.permute.xlu0 %52
  %56 = vset.pattern.permute.xlu0 0
  %57 = vperm.xlu0 %56, %v38
  %v58 = vpop.permute.xlu0 %57
  %61 = vset.pattern.permute.xlu0 0
  %62 = vperm.xlu0 %61, %v39
  %v63 = vpop.permute.xlu0 %62
  %v65 = vmul.f32 %v15, %v43
  %v66 = vmul.f32 %v16, %v43
  %v67 = vmul.f32 %v17, %v48
  %v68 = vmul.f32 %v18, %v48
  %v69 = vmul.f32 %v19, %v53
  %v70 = vmul.f32 %v20, %v53
  %v71 = vmul.f32 %v21, %v58
  %v72 = vmul.f32 %v22, %v58
  %v73 = vmul.f32 %v23, %v63
  %v74 = vmul.f32 %v24, %v63
  %v75 = vmul.f32 %v25, %v43
  %v76 = vmul.f32 %v26, %v43
  %v77 = vmul.f32 %v27, %v48
  %v78 = vmul.f32 %v28, %v48
  %v79 = vmul.f32 %v29, %v53
  %v80 = vmul.f32 %v30, %v53
  %v81 = vmul.f32 %v31, %v58
  %v82 = vmul.f32 %v32, %v58
  %v83 = vmul.f32 %v33, %v63
  %v84 = vmul.f32 %v34, %v63
  %v85 = vadd.f32 %v65, %v67
  %v86 = vadd.f32 %v85, %v69
  %v87 = vadd.f32 %v86, %v71
  %vm88 = vcmask 1043456
  %v89 = vsel %vm88, %v73, 0.0
  %v90 = vadd.f32 %v87, %v89
  %v91 = vrot.slane %v90, 4
  %v92 = vadd.f32 %v90, %v91
  %v93 = vrot.slane %v92, 2
  %v94 = vadd.f32 %v92, %v93
  %v95 = vrot.slane %v94, 1
  %v96 = vadd.f32 %v94, %v95
  %v97 = vadd.f32 %v66, %v68
  %v98 = vadd.f32 %v97, %v70
  %v99 = vadd.f32 %v98, %v72
  %v100 = vsel %vm88, %v74, 0.0
  %v101 = vadd.f32 %v99, %v100
  %v102 = vrot.slane %v101, 4
  %v103 = vadd.f32 %v101, %v102
  %v104 = vrot.slane %v103, 2
  %v105 = vadd.f32 %v103, %v104
  %v106 = vrot.slane %v105, 1
  %v107 = vadd.f32 %v105, %v106
  %v108 = vadd.f32 %v75, %v77
  %v109 = vadd.f32 %v108, %v79
  %v110 = vadd.f32 %v109, %v81
  %v111 = vsel %vm88, %v83, 0.0
  %v112 = vadd.f32 %v110, %v111
  %v113 = vrot.slane %v112, 4
  %v114 = vadd.f32 %v112, %v113
  %v115 = vrot.slane %v114, 2
  %v116 = vadd.f32 %v114, %v115
  %v117 = vrot.slane %v116, 1
  %v118 = vadd.f32 %v116, %v117
  %v119 = vadd.f32 %v76, %v78
  %v120 = vadd.f32 %v119, %v80
  %v121 = vadd.f32 %v120, %v82
  %v122 = vsel %vm88, %v84, 0.0
  %v123 = vadd.f32 %v121, %v122
  %v124 = vrot.slane %v123, 4
  %v125 = vadd.f32 %v123, %v124
  %v126 = vrot.slane %v125, 2
  %v127 = vadd.f32 %v125, %v126
  %v128 = vrot.slane %v127, 1
  %v129 = vadd.f32 %v127, %v128
  %s130 = sld [smem:[#allocation2]]
  %v131 = vstv %s130
  %v132 = vadd.f32 %v96, %v131
  %v133 = vadd.f32 %v107, %v131
  %v134 = vadd.f32 %v118, %v131
  %v135 = vadd.f32 %v129, %v131
  %v136 = vxor.u32 %v132, 2147483648
  %v137 = vxor.u32 %v133, 2147483648
  %v138 = vxor.u32 %v134, 2147483648
  %v139 = vxor.u32 %v135, 2147483648
  %v140 = vmul.f32 %v136, 1.442695
  %v141 = vpow.pop %v140
  %v142 = vmul.f32 %v137, 1.442695
  %v143 = vpow.pop %v142
  %v144 = vmul.f32 %v138, 1.442695
  %v145 = vpow.pop %v144
  %v146 = vmul.f32 %v139, 1.442695
  %v147 = vpow.pop %v146
  %v148 = vadd.f32 %v141, 1.0
  %v149 = vadd.f32 %v143, 1.0
  %v150 = vadd.f32 %v145, 1.0
  %v151 = vadd.f32 %v147, 1.0
  %v152 = vrcp.pop %v148
  %v153 = vmul.f32 %v148, %v152
  %v154 = vsub.f32 1.0, %v153
  %v155 = vmul.f32 %v152, %v154
  %v156 = vadd.f32 %v152, %v155
  %vm157 = vweird.f32 %v148
  %vm158 = vweird.f32 %v152
  %vm159 = vmor %vm157, %vm158
  %v160 = vsel %vm159, %v152, %v156
  %v161 = vand.u32 2147483647, %v148
  %vm162 = vcmp.eq.f32.partialorder %v161, 8.507059e+37
  %v163 = vand.u32 %v148, 2147483648
  %v164 = vor.u32 1.1754944e-38, %v163
  %v165 = vsel %vm162, %v164, %v160
  %v166 = vmul.f32 1.0, %v165
  %v167 = vrcp.pop %v149
  %v168 = vmul.f32 %v149, %v167
  %v169 = vsub.f32 1.0, %v168
  %v170 = vmul.f32 %v167, %v169
  %v171 = vadd.f32 %v167, %v170
  %vm172 = vweird.f32 %v149
  %vm173 = vweird.f32 %v167
  %vm174 = vmor %vm172, %vm173
  %v175 = vsel %vm174, %v167, %v171
  %v176 = vand.u32 2147483647, %v149
  %vm177 = vcmp.eq.f32.partialorder %v176, 8.507059e+37
  %v178 = vand.u32 %v149, 2147483648
  %v179 = vor.u32 1.1754944e-38, %v178
  %v180 = vsel %vm177, %v179, %v175
  %v181 = vmul.f32 1.0, %v180
  %v182 = vrcp.pop %v150
  %v183 = vmul.f32 %v150, %v182
  %v184 = vsub.f32 1.0, %v183
  %v185 = vmul.f32 %v182, %v184
  %v186 = vadd.f32 %v182, %v185
  %vm187 = vweird.f32 %v150
  %vm188 = vweird.f32 %v182
  %vm189 = vmor %vm187, %vm188
  %v190 = vsel %vm189, %v182, %v186
  %v191 = vand.u32 2147483647, %v150
  %vm192 = vcmp.eq.f32.partialorder %v191, 8.507059e+37
  %v193 = vand.u32 %v150, 2147483648
  %v194 = vor.u32 1.1754944e-38, %v193
  %v195 = vsel %vm192, %v194, %v190
  %v196 = vmul.f32 1.0, %v195
  %v197 = vrcp.pop %v151
  %v198 = vmul.f32 %v151, %v197
  %v199 = vsub.f32 1.0, %v198
  %v200 = vmul.f32 %v197, %v199
  %v201 = vadd.f32 %v197, %v200
  %vm202 = vweird.f32 %v151
  %vm203 = vweird.f32 %v197
  %vm204 = vmor %vm202, %vm203
  %v205 = vsel %vm204, %v197, %v201
  %v206 = vand.u32 2147483647, %v151
  %vm207 = vcmp.eq.f32.partialorder %v206, 8.507059e+37
  %v208 = vand.u32 %v151, 2147483648
  %v209 = vor.u32 1.1754944e-38, %v208
  %v210 = vsel %vm207, %v209, %v205
  %v211 = vmul.f32 1.0, %v210
  %v212 = vmul.f32 %v166, 2.0
  %v213 = vmul.f32 %v181, 2.0
  %v214 = vmul.f32 %v196, 2.0
  %v215 = vmul.f32 %v211, 2.0
  %v220 = vrot.slane %v213, 7
  %v221 = vrot.slane %v215, 7
  %vm222 = vcmask 1040384
  %v223 = vsel %vm222, %v212, %v220
  %v224 = vsel %vm222, %v214, %v221
  %v227 = vlaneseq
  %vm228 = vcmp.ge.s32.totalorder %v227, 0
  %vm229 = vcmp.lt.s32.totalorder %v227, 256
  %vm230 = vmand %vm228, %vm229
  %231 = vst.msk [vmem:[%s3] sm:$0x3] %vm230, %v223
  %232 = vst.msk [vmem:[%s3 + $0x2] sm:$0x3] %vm230, %v224
  // Predicated region
  $region14: #{invdepth_forward.1} parent=0 // pred_check
    _
  $region15: #{invdepth_forward.1} parent=0 // pred_check_branch
    %234 = sbr.rel (0) target = $region17
  $region16: #{invdepth_forward.1} parent=0 // pred_region
    _
  $region17: #{invdepth_forward.1} parent=0 // pred_fallthru
    _
  // Predicated region
  $region18: #{invdepth_forward.1} parent=0 // pred_check
    _
  $region19: #{invdepth_forward.1} parent=0 // pred_check_branch
    %236 = sbr.rel (0) target = $region21
  $region20: #{invdepth_forward.1} parent=0 // pred_region
    _
  $region21: #{invdepth_forward.1} parent=0 // pred_fallthru
    _

</llo_original>
